<compile_context>
chip_gen: v5e
topology: v5e:2x2
jax: 0.10.0
libtpu: 0.0.40
codegen_flags: <defaults>
</compile_context>

<pallas_src>
import jax
import jax.numpy as jnp
from jax.experimental import pallas as pl
from jax.experimental.pallas import tpu as pltpu


# ---------------------------------------------------------------------------
# Kernel: whole 4-layer MLP on one lane-dense batch tile.
# Activations are [features, tile_n]; batch -> lanes, features -> sublanes.
# ---------------------------------------------------------------------------
def _mlp_kernel(xT_ref, w1t_ref, b1t_ref, w2t_ref, b2t_ref,
                w3c_ref, b3_ref, w4_ref, b4_ref, o_ref):
    xT = xT_ref[...]                                           # (F, tile_n)

    # Layer 1: (F -> 40)  -- MXU matmul, output lane-dense over batch.
    h1 = jnp.tanh(
        jnp.dot(w1t_ref[...], xT, preferred_element_type=jnp.float32)
        + b1t_ref[...])                                        # (40, tile_n)

    # Layer 2: (40 -> 40) -- MXU matmul.
    h2 = jnp.tanh(
        jnp.dot(w2t_ref[...], h1, preferred_element_type=jnp.float32)
        + b2t_ref[...])                                        # (40, tile_n)

    # Layer 3: (40 -> 1) -- VPU multiply + sublane (XLU) reduction instead of
    # a 1-row matmul that would waste an entire MXU push.
    h3 = jnp.tanh(
        jnp.sum(h2 * w3c_ref[...], axis=0, keepdims=True)      # (1, tile_n)
        + b3_ref[...])

    # Layer 4: (1 -> 1) -- pure scalar VPU op.
    out = jnp.tanh(h3 * w4_ref[...] + b4_ref[...])             # (1, tile_n)

    o_ref[...] = out.astype(o_ref.dtype)


# ---------------------------------------------------------------------------
# Wrapper
# ---------------------------------------------------------------------------
def _round_up(x, m):
    return ((x + m - 1) // m) * m


def _choose_tile_n(n, max_tile=1024):
    # Big tiles (kernel is grid-step-overhead bound), but aim for >=2 steps
    # when the batch allows it so v7x's 2 TensorCores both get work.
    tile = _round_up(pl.cdiv(n, 2), 128)
    return max(128, min(max_tile, tile))


def _full_spec(arr):
    zeros = (0,) * arr.ndim
    return pl.BlockSpec(arr.shape, lambda i: zeros)


def pinn_forward(x, params, *, tile_n=None):
    """x: list of [N, f_i] arrays or single [N, F] array (F = 2*d*M)."""
    if isinstance(x, (list, tuple)):
        x = jnp.concatenate(list(x), axis=1)        # same as torch.cat(x, 1)
    x = x.astype(jnp.float32)
    N, F = x.shape
    (w1, b1), (w2, b2), (w3, b3), (w4, b4) = params

    if tile_n is None:
        tile_n = _choose_tile_n(N)
    n_pad = _round_up(N, tile_n)
    num_tiles = n_pad // tile_n

    # Layout plumbing (wrapper side): transpose to [features, batch] and pad
    # the batch up to a tile multiple (padded columns are discarded below).
    xT = jnp.transpose(x)                                       # (F, N)
    if n_pad != N:
        xT = jnp.pad(xT, ((0, 0), (0, n_pad - N)))

    w1t = jnp.transpose(w1).astype(jnp.float32)                 # (40, F)
    b1t = jnp.reshape(b1, (-1, 1)).astype(jnp.float32)          # (40, 1)
    w2t = jnp.transpose(w2).astype(jnp.float32)                 # (40, 40)
    b2t = jnp.reshape(b2, (-1, 1)).astype(jnp.float32)          # (40, 1)
    w3c = w3.astype(jnp.float32)                                # (40, 1)
    b3s = jnp.reshape(b3, (1, 1)).astype(jnp.float32)           # (1, 1)
    w4s = jnp.reshape(w4, (1, 1)).astype(jnp.float32)           # (1, 1)
    b4s = jnp.reshape(b4, (1, 1)).astype(jnp.float32)           # (1, 1)

    h1d, h2d = w1t.shape[0], w2t.shape[0]
    flops = n_pad * (2 * F * h1d + 2 * h1d * h2d + 2 * h2d + 2)
    transcendentals = n_pad * (h1d + h2d + 1 + 1)
    bytes_accessed = 4 * (n_pad * F + n_pad
                          + w1t.size + b1t.size + w2t.size + b2t.size
                          + w3c.size + 3)

    out = pl.pallas_call(
        _mlp_kernel,
        out_shape=jax.ShapeDtypeStruct((1, n_pad), jnp.float32),
        grid_spec=pltpu.PrefetchScalarGridSpec(
            num_scalar_prefetch=0,
            grid=(num_tiles,),
            in_specs=[
                pl.BlockSpec((F, tile_n), lambda i: (0, i)),
                _full_spec(w1t), _full_spec(b1t),
                _full_spec(w2t), _full_spec(b2t),
                _full_spec(w3c), _full_spec(b3s),
                _full_spec(w4s), _full_spec(b4s),
            ],
            out_specs=pl.BlockSpec((1, tile_n), lambda i: (0, i)),
        ),
        compiler_params=pltpu.CompilerParams(
            dimension_semantics=("parallel",),
        ),
        cost_estimate=pl.CostEstimate(
            flops=int(flops),
            transcendentals=int(transcendentals),
            bytes_accessed=int(bytes_accessed),
        ),
    )(xT, w1t, b1t, w2t, b2t, w3c, b3s, w4s, b4s)

    return out[0, :N].reshape(N, 1)


# ---------------------------------------------------------------------------
# Deterministic init matching nn.Linear default (U(-1/sqrt(fan_in), +...)).
# ---------------------------------------------------------------------------
def init_pinn_params(key, d, M=3):
    li = [2 * d * M, 40, 40, 1]
    dims = []
    for i in range(len(li)):
        out = li[i + 1] if i != len(li) - 1 else 1
        dims.append((li[i], out))        # -> (6d,40), (40,40), (40,1), (1,1)
    params = []
    for (fan_in, fan_out) in dims:
        key, kw, kb = jax.random.split(key, 3)
        bound = 1.0 / jnp.sqrt(jnp.float32(fan_in))
        w = jax.random.uniform(kw, (fan_in, fan_out), jnp.float32, -bound, bound)
        b = jax.random.uniform(kb, (1, fan_out), jnp.float32, -bound, bound)
        params.append((w, b))
    return params


def pinn_forward_ref(x, params):
    if isinstance(x, (list, tuple)):
        x = jnp.concatenate(list(x), axis=1)
    h = x.astype(jnp.float32)
    for (w, b) in params:
        h = jnp.tanh(jnp.dot(h, w, precision=jax.lax.Precision.HIGHEST) + b)
    return h


if __name__ == "__main__":
    # TODO(synk): original module runs in float64; TPU kernel uses float32.
    d, M = 3, 3            # PINN(d=3, ...); M is fixed to 3 in the module
    N = 200                # small batch (module uses d*1000 = 3000); also
                           # exercises pad-and-slice (200 is not a tile multiple)
    F = 2 * d * M          # 18 input features

    key = jax.random.PRNGKey(0)
    kparams, kx = jax.random.split(key)
    params = init_pinn_params(kparams, d, M)

    # forward() accepts a list of per-dimension feature columns -> concat
    x_full = jax.random.uniform(kx, (N, F), jnp.float32) * 2.0 * jnp.pi
    x_list = [x_full[:, i * (2 * M):(i + 1) * (2 * M)] for i in range(d)]

    out = pinn_forward(x_list, params)
    out = jax.block_until_ready(out)

    ref = pinn_forward_ref(x_list, params)
    assert out.shape == (N, 1)
    assert jnp.allclose(out, ref, atol=5e-5, rtol=5e-5), "mismatch vs JAX reference"

    print("KERNEL_OK")
</pallas_src>

<mosaic_0001>
module attributes {stable_mosaic.version = 11 : i64} {
  func.func @_mlp_kernel(%arg0: i32, %arg1: memref<18x128xf32, #tpu.memory_space<vmem>>, %arg2: memref<40x18xf32, #tpu.memory_space<vmem>>, %arg3: memref<40x1xf32, #tpu.memory_space<vmem>>, %arg4: memref<40x40xf32, #tpu.memory_space<vmem>>, %arg5: memref<40x1xf32, #tpu.memory_space<vmem>>, %arg6: memref<40x1xf32, #tpu.memory_space<vmem>>, %arg7: memref<1x1xf32, #tpu.memory_space<vmem>>, %arg8: memref<1x1xf32, #tpu.memory_space<vmem>>, %arg9: memref<1x1xf32, #tpu.memory_space<vmem>>, %arg10: memref<1x128xf32, #tpu.memory_space<vmem>>) attributes {dimension_semantics = [#tpu.dimension_semantics<parallel>], iteration_bounds = array<i64: 2>, scalar_prefetch = 0 : i64, scratch_operands = 0 : i64, tpu.core_type = #tpu.core_type<tc>, window_params = [{transform_indices = @transform_0, window_bounds = array<i64: 18, 128>}, {pipeline_mode = #tpu.pipeline_mode<synchronous>, transform_indices = @transform_1, window_bounds = array<i64: 40, 18>}, {pipeline_mode = #tpu.pipeline_mode<synchronous>, transform_indices = @transform_2, window_bounds = array<i64: 40, 1>}, {pipeline_mode = #tpu.pipeline_mode<synchronous>, transform_indices = @transform_3, window_bounds = array<i64: 40, 40>}, {pipeline_mode = #tpu.pipeline_mode<synchronous>, transform_indices = @transform_4, window_bounds = array<i64: 40, 1>}, {pipeline_mode = #tpu.pipeline_mode<synchronous>, transform_indices = @transform_5, window_bounds = array<i64: 40, 1>}, {pipeline_mode = #tpu.pipeline_mode<synchronous>, transform_indices = @transform_6, window_bounds = array<i64: 1, 1>}, {pipeline_mode = #tpu.pipeline_mode<synchronous>, transform_indices = @transform_7, window_bounds = array<i64: 1, 1>}, {pipeline_mode = #tpu.pipeline_mode<synchronous>, transform_indices = @transform_8, window_bounds = array<i64: 1, 1>}, {transform_indices = @transform_9, window_bounds = array<i64: 1, 128>}]} {
    %c0 = arith.constant 0 : index
    %c0_0 = arith.constant 0 : index
    %0 = vector.load %arg1[%c0, %c0_0] : memref<18x128xf32, #tpu.memory_space<vmem>>, vector<18x128xf32>
    %c0_1 = arith.constant 0 : index
    %c0_2 = arith.constant 0 : index
    %1 = vector.load %arg2[%c0_1, %c0_2] : memref<40x18xf32, #tpu.memory_space<vmem>>, vector<40x18xf32>
    %cst = arith.constant dense<0.000000e+00> : vector<40x128xf32>
    %2 = tpu.matmul %1, %0, %cst {dimension_numbers = #tpu.dot_dimension_numbers<[1], [0], [0], [1], [0, 0, 1, 1], [], []>} : vector<40x18xf32>, vector<18x128xf32>, vector<40x128xf32> -> vector<40x128xf32>
    %c0_3 = arith.constant 0 : index
    %c0_4 = arith.constant 0 : index
    %3 = vector.load %arg3[%c0_3, %c0_4] : memref<40x1xf32, #tpu.memory_space<vmem>>, vector<40x1xf32>
    %4 = vector.broadcast %3 : vector<40x1xf32> to vector<40x128xf32>
    %5 = arith.addf %2, %4 : vector<40x128xf32>
    %6 = math.tanh %5 : vector<40x128xf32>
    %c0_5 = arith.constant 0 : index
    %c0_6 = arith.constant 0 : index
    %7 = vector.load %arg4[%c0_5, %c0_6] : memref<40x40xf32, #tpu.memory_space<vmem>>, vector<40x40xf32>
    %cst_7 = arith.constant dense<0.000000e+00> : vector<40x128xf32>
    %8 = tpu.matmul %7, %6, %cst_7 {dimension_numbers = #tpu.dot_dimension_numbers<[1], [0], [0], [1], [0, 0, 1, 1], [], []>} : vector<40x40xf32>, vector<40x128xf32>, vector<40x128xf32> -> vector<40x128xf32>
    %c0_8 = arith.constant 0 : index
    %c0_9 = arith.constant 0 : index
    %9 = vector.load %arg5[%c0_8, %c0_9] : memref<40x1xf32, #tpu.memory_space<vmem>>, vector<40x1xf32>
    %10 = vector.broadcast %9 : vector<40x1xf32> to vector<40x128xf32>
    %11 = arith.addf %8, %10 : vector<40x128xf32>
    %12 = math.tanh %11 : vector<40x128xf32>
    %c0_10 = arith.constant 0 : index
    %c0_11 = arith.constant 0 : index
    %13 = vector.load %arg6[%c0_10, %c0_11] : memref<40x1xf32, #tpu.memory_space<vmem>>, vector<40x1xf32>
    %14 = vector.broadcast %13 : vector<40x1xf32> to vector<40x128xf32>
    %15 = arith.mulf %12, %14 : vector<40x128xf32>
    %cst_12 = arith.constant dense<0.000000e+00> : vector<128xf32>
    %16 = vector.multi_reduction <add>, %15, %cst_12 [0] : vector<40x128xf32> to vector<128xf32>
    %17 = vector.shape_cast %16 : vector<128xf32> to vector<1x128xf32>
    %c0_13 = arith.constant 0 : index
    %c0_14 = arith.constant 0 : index
    %18 = vector.load %arg7[%c0_13, %c0_14] : memref<1x1xf32, #tpu.memory_space<vmem>>, vector<1x1xf32>
    %19 = vector.broadcast %18 : vector<1x1xf32> to vector<1x128xf32>
    %20 = arith.addf %17, %19 : vector<1x128xf32>
    %21 = math.tanh %20 : vector<1x128xf32>
    %c0_15 = arith.constant 0 : index
    %c0_16 = arith.constant 0 : index
    %22 = vector.load %arg8[%c0_15, %c0_16] : memref<1x1xf32, #tpu.memory_space<vmem>>, vector<1x1xf32>
    %23 = vector.broadcast %22 : vector<1x1xf32> to vector<1x128xf32>
    %24 = arith.mulf %21, %23 : vector<1x128xf32>
    %c0_17 = arith.constant 0 : index
    %c0_18 = arith.constant 0 : index
    %25 = vector.load %arg9[%c0_17, %c0_18] : memref<1x1xf32, #tpu.memory_space<vmem>>, vector<1x1xf32>
    %26 = vector.broadcast %25 : vector<1x1xf32> to vector<1x128xf32>
    %27 = arith.addf %24, %26 : vector<1x128xf32>
    %28 = math.tanh %27 : vector<1x128xf32>
    %c0_19 = arith.constant 0 : index
    %c0_20 = arith.constant 0 : index
    %29 = vector.load %arg10[%c0_19, %c0_20] : memref<1x128xf32, #tpu.memory_space<vmem>>, vector<1x128xf32>
    tpu.vector_store %arg10[%c0_19, %c0_20], %28 {strides = array<i32>} : memref<1x128xf32, #tpu.memory_space<vmem>>, vector<1x128xf32>,
    return
  }
  func.func @transform_0(%arg0: i32) -> (i32, i32) {
    %c0_i32 = arith.constant 0 : i32
    %c0_i32_0 = arith.constant 0 : i32
    return %c0_i32, %arg0 : i32, i32
  }
  func.func @transform_1(%arg0: i32) -> (i32, i32) {
    %c0_i32 = arith.constant 0 : i32
    %c0_i32_0 = arith.constant 0 : i32
    %c0_i32_1 = arith.constant 0 : i32
    return %c0_i32, %c0_i32_0 : i32, i32
  }
  func.func @transform_2(%arg0: i32) -> (i32, i32) {
    %c0_i32 = arith.constant 0 : i32
    %c0_i32_0 = arith.constant 0 : i32
    %c0_i32_1 = arith.constant 0 : i32
    return %c0_i32, %c0_i32_0 : i32, i32
  }
  func.func @transform_3(%arg0: i32) -> (i32, i32) {
    %c0_i32 = arith.constant 0 : i32
    %c0_i32_0 = arith.constant 0 : i32
    %c0_i32_1 = arith.constant 0 : i32
    return %c0_i32, %c0_i32_0 : i32, i32
  }
  func.func @transform_4(%arg0: i32) -> (i32, i32) {
    %c0_i32 = arith.constant 0 : i32
    %c0_i32_0 = arith.constant 0 : i32
    %c0_i32_1 = arith.constant 0 : i32
    return %c0_i32, %c0_i32_0 : i32, i32
  }
  func.func @transform_5(%arg0: i32) -> (i32, i32) {
    %c0_i32 = arith.constant 0 : i32
    %c0_i32_0 = arith.constant 0 : i32
    %c0_i32_1 = arith.constant 0 : i32
    return %c0_i32, %c0_i32_0 : i32, i32
  }
  func.func @transform_6(%arg0: i32) -> (i32, i32) {
    %c0_i32 = arith.constant 0 : i32
    %c0_i32_0 = arith.constant 0 : i32
    %c0_i32_1 = arith.constant 0 : i32
    return %c0_i32, %c0_i32_0 : i32, i32
  }
  func.func @transform_7(%arg0: i32) -> (i32, i32) {
    %c0_i32 = arith.constant 0 : i32
    %c0_i32_0 = arith.constant 0 : i32
    %c0_i32_1 = arith.constant 0 : i32
    return %c0_i32, %c0_i32_0 : i32, i32
  }
  func.func @transform_8(%arg0: i32) -> (i32, i32) {
    %c0_i32 = arith.constant 0 : i32
    %c0_i32_0 = arith.constant 0 : i32
    %c0_i32_1 = arith.constant 0 : i32
    return %c0_i32, %c0_i32_0 : i32, i32
  }
  func.func @transform_9(%arg0: i32) -> (i32, i32) {
    %c0_i32 = arith.constant 0 : i32
    %c0_i32_0 = arith.constant 0 : i32
    return %c0_i32, %arg0 : i32, i32
  }
}

</mosaic_0001>

<llo_original>
// kernel: tpu_custom_call.1
$region0: #{tpu_custom_call.1}
  #allocation0 [shape = 'u32[]', space=smem, size = 0x4, offset = 0x4, fixed_abs, tag = 'smem constant byte address 0x4 - core index']
  #allocation1 [shape = 'u32[72,128]{1,0:T(1,128)}', space=vmem, size = 0x9000, scoped, tag = 'internal scratch']
  #allocation2 [shape = 'f32[1,1]{1,0:T(1,128)S(1)}', space=vmem, size = 0x200, scoped, tag = 'scoped memory for tpu_custom_call.1']
  #allocation3 [shape = 'f32[1,1]{1,0:T(1,128)S(1)}', space=vmem, size = 0x200, scoped, tag = 'scoped memory for tpu_custom_call.1']
  #allocation4 [shape = 'f32[1,1]{1,0:T(1,128)S(1)}', space=vmem, size = 0x200, scoped, tag = 'scoped memory for tpu_custom_call.1']
  %s0 = inlined_call_operand.vmem [shape: f32[18,256], index: 0, kind: input, shape index: {}]
  %s1 = inlined_call_operand.vmem [shape: f32[40,18], index: 1, kind: input, shape index: {}]
  %s2 = inlined_call_operand.vmem [shape: f32[40,1], index: 2, kind: input, shape index: {}]
  %s3 = inlined_call_operand.vmem [shape: f32[40,40], index: 3, kind: input, shape index: {}]
  %s4 = inlined_call_operand.vmem [shape: f32[40,1], index: 4, kind: input, shape index: {}]
  %s5 = inlined_call_operand.vmem [shape: f32[40,1], index: 5, kind: input, shape index: {}]
  %s6 = inlined_call_operand.<no memory space> [shape: f32[1,1], index: 6, kind: input, shape index: {}]
  %s7 = inlined_call_operand.<no memory space> [shape: f32[1,1], index: 7, kind: input, shape index: {}]
  %s8 = inlined_call_operand.<no memory space> [shape: f32[1,1], index: 8, kind: input, shape index: {}]
  %s9 = inlined_call_operand.hbm [shape: f32[1,256], index: 9, kind: output, shape index: {}]
  %s10 = sld [smem:[#allocation0]]
  $region107: #{tpu_custom_call.1} parent=0
    _
  %s12 = ssub.s32 1, %s10
  %s13 = scalar_select 0, %s12, %s10
  %v14 = vstv %s6
  %15 = vst [vmem:[#allocation2] sm:$0x1] %v14
  %v16 = vstv %s7
  %17 = vst [vmem:[#allocation3] sm:$0x1] %v16
  %v18 = vstv %s8
  %19 = vst [vmem:[#allocation4] sm:$0x1] %v18
  $region1: #{tpu_custom_call.1} parent=0
    #allocation5 [shape = 'u8[24576]{0}', space=vmem, size = 0x6000, scoped, tag = 'input window, operand 0']
    #allocation6 [shape = 'u8[1024]{0}', space=vmem, size = 0x400, scoped, tag = 'output window, operand 0']
    #allocation7 [shape = 's32[2]{0}', space=sflag, size = 0x8, scoped, tag = 'scoped memory for tpu_custom_call.1']
    %20 = vsyncpa [#allocation7], 0
    %s21 = scalar_lea.sflag [#allocation7], 1
    %22 = vsyncpa %s21, 0
    loop: start=0, step=1, limit=4
    $region2: #{tpu_custom_call.1} parent=1 // loop_pre_header
      _
    $region3: #{tpu_custom_call.1} parent=1 // loop_header
      %s24 = sphi 0, %s28
      %p25 = scmp.ge.s32.totalorder %s24, 4
      %s34 = sphi 0, %s36
      %s37 = sphi 0, %s34
      %s38 = sphi 0, %s37
      %s54 = sphi 0, %s38
      %s58 = sphi 0, %s58
      %s60 = sphi 0, %s58
      %s61 = sphi 0, %s60
      %s75 = sphi 0, %s61
      %s79 = sphi 0, %s79
      %s81 = sphi 0, %s79
      %s82 = sphi 0, %s81
      %s96 = sphi 0, %s82
      %s100 = sphi 0, %s100
      %s102 = sphi 0, %s100
      %s103 = sphi 0, %s102
      %s117 = sphi 0, %s103
      %s121 = sphi 0, %s121
      %s123 = sphi 0, %s121
      %s124 = sphi 0, %s123
      %s138 = sphi 0, %s124
      %s142 = sphi 0, %s142
      %s144 = sphi 0, %s142
      %s145 = sphi 0, %s144
      %s159 = sphi 0, %s145
      %s163 = sphi 0, %s163
      %s165 = sphi 0, %s163
      %s166 = sphi 0, %s165
      %s180 = sphi 0, %s166
      %s184 = sphi 0, %s184
      %s186 = sphi 0, %s184
      %s187 = sphi 0, %s186
      %s201 = sphi 0, %s187
      %s205 = sphi 0, %s205
      %s207 = sphi 0, %s205
      %s208 = sphi 0, %s207
      %s222 = sphi 0, %s208
      %s228 = sphi 0, %s230
      %s231 = sphi 0, %s228
      %s232 = sphi 0, %s231
      %s248 = sphi 0, %s232
    $region4: #{tpu_custom_call.1} parent=1 // loop_header_branch
      %27 = sbr.rel (%p25) target = $region8
    $region5: #{tpu_custom_call.1} parent=1 // loop_body
      %s29 = ssub.s32 %s24, 1
      %s30 = ssub.s32 %s24, 2
      %s31 = sadd.s32 %s24, 1
      %s32 = ssub.s32 %s24, %s31
      %p33 = scmp.eq.s32.totalorder %s32, 0
      %s35 = sadd.s32 %s34, 1
      %s36 = scalar_select %p33, %s34, %s35
      %p39 = pneg %p33
      %p40 = scmp.eq.s32.totalorder %s24, 1
      %p41 = por %p39, %p40
      %p42 = scmp.ne.s32.totalorder %s34, %s37
      %p43 = scmp.eq.s32.totalorder %s24, 0
      %p44 = por %p42, %p43
      %p45 = scmp.ne.s32.totalorder %s34, %s37
      %p46 = scmp.eq.s32.totalorder %s29, 1
      %p47 = por %p45, %p46
      %p48 = scmp.ne.s32.totalorder %s37, %s38
      %p49 = scmp.eq.s32.totalorder %s29, 0
      %p50 = por %p48, %p49
      %p51 = scmp.ne.s32.totalorder %s37, %s38
      %p52 = scmp.eq.s32.totalorder %s30, 1
      %p53 = por %p51, %p52
      %p55 = scmp.ne.s32.totalorder %s38, %s54
      %p56 = scmp.eq.s32.totalorder %s30, 0
      %p57 = por %p55, %p56
      %s59 = sadd.s32 %s58, 1
      %p62 = scmp.eq.s32.totalorder %s24, 1
      %p63 = scmp.ne.s32.totalorder %s58, %s60
      %p64 = scmp.eq.s32.totalorder %s24, 0
      %p65 = por %p63, %p64
      %p66 = scmp.ne.s32.totalorder %s58, %s60
      %p67 = scmp.eq.s32.totalorder %s29, 1
      %p68 = por %p66, %p67
      %p69 = scmp.ne.s32.totalorder %s60, %s61
      %p70 = scmp.eq.s32.totalorder %s29, 0
      %p71 = por %p69, %p70
      %p72 = scmp.ne.s32.totalorder %s60, %s61
      %p73 = scmp.eq.s32.totalorder %s30, 1
      %p74 = por %p72, %p73
      %p76 = scmp.ne.s32.totalorder %s61, %s75
      %p77 = scmp.eq.s32.totalorder %s30, 0
      %p78 = por %p76, %p77
      %s80 = sadd.s32 %s79, 1
      %p83 = scmp.eq.s32.totalorder %s24, 1
      %p84 = scmp.ne.s32.totalorder %s79, %s81
      %p85 = scmp.eq.s32.totalorder %s24, 0
      %p86 = por %p84, %p85
      %p87 = scmp.ne.s32.totalorder %s79, %s81
      %p88 = scmp.eq.s32.totalorder %s29, 1
      %p89 = por %p87, %p88
      %p90 = scmp.ne.s32.totalorder %s81, %s82
      %p91 = scmp.eq.s32.totalorder %s29, 0
      %p92 = por %p90, %p91
      %p93 = scmp.ne.s32.totalorder %s81, %s82
      %p94 = scmp.eq.s32.totalorder %s30, 1
      %p95 = por %p93, %p94
      %p97 = scmp.ne.s32.totalorder %s82, %s96
      %p98 = scmp.eq.s32.totalorder %s30, 0
      %p99 = por %p97, %p98
      %s101 = sadd.s32 %s100, 1
      %p104 = scmp.eq.s32.totalorder %s24, 1
      %p105 = scmp.ne.s32.totalorder %s100, %s102
      %p106 = scmp.eq.s32.totalorder %s24, 0
      %p107 = por %p105, %p106
      %p108 = scmp.ne.s32.totalorder %s100, %s102
      %p109 = scmp.eq.s32.totalorder %s29, 1
      %p110 = por %p108, %p109
      %p111 = scmp.ne.s32.totalorder %s102, %s103
      %p112 = scmp.eq.s32.totalorder %s29, 0
      %p113 = por %p111, %p112
      %p114 = scmp.ne.s32.totalorder %s102, %s103
      %p115 = scmp.eq.s32.totalorder %s30, 1
      %p116 = por %p114, %p115
      %p118 = scmp.ne.s32.totalorder %s103, %s117
      %p119 = scmp.eq.s32.totalorder %s30, 0
      %p120 = por %p118, %p119
      %s122 = sadd.s32 %s121, 1
      %p125 = scmp.eq.s32.totalorder %s24, 1
      %p126 = scmp.ne.s32.totalorder %s121, %s123
      %p127 = scmp.eq.s32.totalorder %s24, 0
      %p128 = por %p126, %p127
      %p129 = scmp.ne.s32.totalorder %s121, %s123
      %p130 = scmp.eq.s32.totalorder %s29, 1
      %p131 = por %p129, %p130
      %p132 = scmp.ne.s32.totalorder %s123, %s124
      %p133 = scmp.eq.s32.totalorder %s29, 0
      %p134 = por %p132, %p133
      %p135 = scmp.ne.s32.totalorder %s123, %s124
      %p136 = scmp.eq.s32.totalorder %s30, 1
      %p137 = por %p135, %p136
      %p139 = scmp.ne.s32.totalorder %s124, %s138
      %p140 = scmp.eq.s32.totalorder %s30, 0
      %p141 = por %p139, %p140
      %s143 = sadd.s32 %s142, 1
      %p146 = scmp.eq.s32.totalorder %s24, 1
      %p147 = scmp.ne.s32.totalorder %s142, %s144
      %p148 = scmp.eq.s32.totalorder %s24, 0
      %p149 = por %p147, %p148
      %p150 = scmp.ne.s32.totalorder %s142, %s144
      %p151 = scmp.eq.s32.totalorder %s29, 1
      %p152 = por %p150, %p151
      %p153 = scmp.ne.s32.totalorder %s144, %s145
      %p154 = scmp.eq.s32.totalorder %s29, 0
      %p155 = por %p153, %p154
      %p156 = scmp.ne.s32.totalorder %s144, %s145
      %p157 = scmp.eq.s32.totalorder %s30, 1
      %p158 = por %p156, %p157
      %p160 = scmp.ne.s32.totalorder %s145, %s159
      %p161 = scmp.eq.s32.totalorder %s30, 0
      %p162 = por %p160, %p161
      %s164 = sadd.s32 %s163, 1
      %p167 = scmp.eq.s32.totalorder %s24, 1
      %p168 = scmp.ne.s32.totalorder %s163, %s165
      %p169 = scmp.eq.s32.totalorder %s24, 0
      %p170 = por %p168, %p169
      %p171 = scmp.ne.s32.totalorder %s163, %s165
      %p172 = scmp.eq.s32.totalorder %s29, 1
      %p173 = por %p171, %p172
      %p174 = scmp.ne.s32.totalorder %s165, %s166
      %p175 = scmp.eq.s32.totalorder %s29, 0
      %p176 = por %p174, %p175
      %p177 = scmp.ne.s32.totalorder %s165, %s166
      %p178 = scmp.eq.s32.totalorder %s30, 1
      %p179 = por %p177, %p178
      %p181 = scmp.ne.s32.totalorder %s166, %s180
      %p182 = scmp.eq.s32.totalorder %s30, 0
      %p183 = por %p181, %p182
      %s185 = sadd.s32 %s184, 1
      %p188 = scmp.eq.s32.totalorder %s24, 1
      %p189 = scmp.ne.s32.totalorder %s184, %s186
      %p190 = scmp.eq.s32.totalorder %s24, 0
      %p191 = por %p189, %p190
      %p192 = scmp.ne.s32.totalorder %s184, %s186
      %p193 = scmp.eq.s32.totalorder %s29, 1
      %p194 = por %p192, %p193
      %p195 = scmp.ne.s32.totalorder %s186, %s187
      %p196 = scmp.eq.s32.totalorder %s29, 0
      %p197 = por %p195, %p196
      %p198 = scmp.ne.s32.totalorder %s186, %s187
      %p199 = scmp.eq.s32.totalorder %s30, 1
      %p200 = por %p198, %p199
      %p202 = scmp.ne.s32.totalorder %s187, %s201
      %p203 = scmp.eq.s32.totalorder %s30, 0
      %p204 = por %p202, %p203
      %s206 = sadd.s32 %s205, 1
      %p209 = scmp.eq.s32.totalorder %s24, 1
      %p210 = scmp.ne.s32.totalorder %s205, %s207
      %p211 = scmp.eq.s32.totalorder %s24, 0
      %p212 = por %p210, %p211
      %p213 = scmp.ne.s32.totalorder %s205, %s207
      %p214 = scmp.eq.s32.totalorder %s29, 1
      %p215 = por %p213, %p214
      %p216 = scmp.ne.s32.totalorder %s207, %s208
      %p217 = scmp.eq.s32.totalorder %s29, 0
      %p218 = por %p216, %p217
      %p219 = scmp.ne.s32.totalorder %s207, %s208
      %p220 = scmp.eq.s32.totalorder %s30, 1
      %p221 = por %p219, %p220
      %p223 = scmp.ne.s32.totalorder %s208, %s222
      %p224 = scmp.eq.s32.totalorder %s30, 0
      %p225 = por %p223, %p224
      %s226 = ssub.s32 %s24, %s31
      %p227 = scmp.eq.s32.totalorder %s226, 0
      %s229 = sadd.s32 %s228, 1
      %s230 = scalar_select %p227, %s228, %s229
      %p233 = pneg %p227
      %p234 = scmp.eq.s32.totalorder %s24, 1
      %p235 = por %p233, %p234
      %p236 = scmp.ne.s32.totalorder %s228, %s231
      %p237 = scmp.eq.s32.totalorder %s24, 0
      %p238 = por %p236, %p237
      %p239 = scmp.ne.s32.totalorder %s228, %s231
      %p240 = scmp.eq.s32.totalorder %s29, 1
      %p241 = por %p239, %p240
      %p242 = scmp.ne.s32.totalorder %s231, %s232
      %p243 = scmp.eq.s32.totalorder %s29, 0
      %p244 = por %p242, %p243
      %p245 = scmp.ne.s32.totalorder %s231, %s232
      %p246 = scmp.eq.s32.totalorder %s30, 1
      %p247 = por %p245, %p246
      %p249 = scmp.ne.s32.totalorder %s232, %s248
      %p250 = scmp.eq.s32.totalorder %s30, 0
      %p251 = por %p249, %p250
      %p252 = scmp.le.s32.totalorder 1, %s24
      %p253 = scmp.lt.s32.totalorder %s24, 3
      %p254 = pnand %p252, %p253
      %p255 = pneg %p254
      // Predicated region
      $region9: #{tpu_custom_call.1} parent=5 // pred_check
        _
      $region10: #{tpu_custom_call.1} parent=5 // pred_check_branch
        %257 = sbr.rel (%p254) target = $region12
      $region11: #{tpu_custom_call.1} parent=5 // pred_region
        %s258 = ssub.s32 %s24, 1
        // Predicated region
        $region13: #{tpu_custom_call.1} parent=11 // pred_check
          %p259 = pneg %p71
        $region14: #{tpu_custom_call.1} parent=11 // pred_check_branch
          %261 = sbr.rel (%p259) target = $region16
        $region15: #{tpu_custom_call.1} parent=11 // pred_region
          _
        $region16: #{tpu_custom_call.1} parent=11 // pred_fallthru
          _
        // Predicated region
        $region17: #{tpu_custom_call.1} parent=11 // pred_check
          %p262 = pneg %p92
        $region18: #{tpu_custom_call.1} parent=11 // pred_check_branch
          %264 = sbr.rel (%p262) target = $region20
        $region19: #{tpu_custom_call.1} parent=11 // pred_region
          _
        $region20: #{tpu_custom_call.1} parent=11 // pred_fallthru
          _
        // Predicated region
        $region21: #{tpu_custom_call.1} parent=11 // pred_check
          %p265 = pneg %p113
        $region22: #{tpu_custom_call.1} parent=11 // pred_check_branch
          %267 = sbr.rel (%p265) target = $region24
        $region23: #{tpu_custom_call.1} parent=11 // pred_region
          _
        $region24: #{tpu_custom_call.1} parent=11 // pred_fallthru
          _
        // Predicated region
        $region25: #{tpu_custom_call.1} parent=11 // pred_check
          %p268 = pneg %p134
        $region26: #{tpu_custom_call.1} parent=11 // pred_check_branch
          %270 = sbr.rel (%p268) target = $region28
        $region27: #{tpu_custom_call.1} parent=11 // pred_region
          _
        $region28: #{tpu_custom_call.1} parent=11 // pred_fallthru
          _
        // Predicated region
        $region29: #{tpu_custom_call.1} parent=11 // pred_check
          %p271 = pneg %p155
        $region30: #{tpu_custom_call.1} parent=11 // pred_check_branch
          %273 = sbr.rel (%p271) target = $region32
        $region31: #{tpu_custom_call.1} parent=11 // pred_region
          _
        $region32: #{tpu_custom_call.1} parent=11 // pred_fallthru
          _
        // Predicated region
        $region33: #{tpu_custom_call.1} parent=11 // pred_check
          %p274 = pneg %p176
        $region34: #{tpu_custom_call.1} parent=11 // pred_check_branch
          %276 = sbr.rel (%p274) target = $region36
        $region35: #{tpu_custom_call.1} parent=11 // pred_region
          _
        $region36: #{tpu_custom_call.1} parent=11 // pred_fallthru
          _
        // Predicated region
        $region37: #{tpu_custom_call.1} parent=11 // pred_check
          %p277 = pneg %p197
        $region38: #{tpu_custom_call.1} parent=11 // pred_check_branch
          %279 = sbr.rel (%p277) target = $region40
        $region39: #{tpu_custom_call.1} parent=11 // pred_region
          _
        $region40: #{tpu_custom_call.1} parent=11 // pred_fallthru
          _
        // Predicated region
        $region41: #{tpu_custom_call.1} parent=11 // pred_check
          %p280 = pneg %p218
        $region42: #{tpu_custom_call.1} parent=11 // pred_check_branch
          %282 = sbr.rel (%p280) target = $region44
        $region43: #{tpu_custom_call.1} parent=11 // pred_region
          _
        $region44: #{tpu_custom_call.1} parent=11 // pred_fallthru
          _
      $region12: #{tpu_custom_call.1} parent=5 // pred_fallthru
        _
      %p283 = scmp.lt.s32.totalorder %s24, 2
      // Predicated region
      $region45: #{tpu_custom_call.1} parent=5 // pred_check
        %p284 = pneg %p283
      $region46: #{tpu_custom_call.1} parent=5 // pred_check_branch
        %286 = sbr.rel (%p284) target = $region48
      $region47: #{tpu_custom_call.1} parent=5 // pred_region
        // Predicated region
        $region49: #{tpu_custom_call.1} parent=47 // pred_check
          %p287 = pneg %p44
        $region50: #{tpu_custom_call.1} parent=47 // pred_check_branch
          %289 = sbr.rel (%p287) target = $region52
        $region51: #{tpu_custom_call.1} parent=47 // pred_region
          %s290 = sand.u32 %s34, 1
          %s291 = sand.u32 %s34, 1
          %s292 = smul.addr %s291, 24
          %s293 = scalar_lea.vmem [#allocation5], %s292
          %s294 = smul.addr %s24, 8
          %s295 = scalar_lea.vmem %s0, %s294
          // Predicated region
          $region53: #{tpu_custom_call.1} parent=51 // pred_check
            _
          $region54: #{tpu_custom_call.1} parent=51 // pred_check_branch
            %297 = sbr.rel (0) target = $region56
          $region55: #{tpu_custom_call.1} parent=51 // pred_region
            // Predicated region
            $region57: #{tpu_custom_call.1} parent=55 // pred_check
              _
            $region58: #{tpu_custom_call.1} parent=55 // pred_check_branch
              %299 = sbr.rel (0) target = $region60
            $region59: #{tpu_custom_call.1} parent=55 // pred_region
              // Predicated region
              $region72: #{tpu_custom_call.1} parent=59 // pred_check
                _
              $region73: #{tpu_custom_call.1} parent=59 // pred_check_branch
                %319 = sbr.rel (0) target = $region75
              $region74: #{tpu_custom_call.1} parent=59 // pred_region
                loop: start=0, step=1, limit=1
                $region76: #{tpu_custom_call.1} parent=74 // loop_pre_header
                  _
                $region77: #{tpu_custom_call.1} parent=74 // loop_header
                  %s321 = sphi 0, %s325
                  %p322 = scmp.ge.s32.totalorder %s321, 1
                  %s326 = sphi %s295, %s295
                  %s327 = sphi %s293, %s293
                $region78: #{tpu_custom_call.1} parent=74 // loop_header_branch
                  %324 = sbr.rel (%p322) target = $region82
                $region79: #{tpu_custom_call.1} parent=74 // loop_body
                  %v328 = vld [vmem:[%s326] sm:$0xff]
                  %329 = vst [vmem:[%s327] sm:$0xff] %v328
                  %v330 = vld [vmem:[%s326 + $0x10] sm:$0xff]
                  %331 = vst [vmem:[%s327 + $0x8] sm:$0xff] %v330
                  %v332 = vld [vmem:[%s326 + $0x20] sm:$0xff]
                  %333 = vst [vmem:[%s327 + $0x10] sm:$0xff] %v332
                $region80: #{tpu_custom_call.1} parent=74 // loop_footer
                  %s325 = sadd.s32 1, %s321
                $region81: #{tpu_custom_call.1} parent=74 // loop_footer_branch
                  %320 = sbr.rel target = $region77
                $region82: #{tpu_custom_call.1} parent=74 // loop_exit
                  _
              $region75: #{tpu_custom_call.1} parent=59 // pred_fallthru
                _
              // Predicated region
              $region83: #{tpu_custom_call.1} parent=59 // pred_check
                _
              $region84: #{tpu_custom_call.1} parent=59 // pred_check_branch
                %335 = sbr.rel target = $region86
              $region85: #{tpu_custom_call.1} parent=59 // pred_region
                _
              $region86: #{tpu_custom_call.1} parent=59 // pred_fallthru
                _
            $region60: #{tpu_custom_call.1} parent=55 // pred_fallthru
              _
            // Predicated region
            $region61: #{tpu_custom_call.1} parent=55 // pred_check
              _
            $region62: #{tpu_custom_call.1} parent=55 // pred_check_branch
              %301 = sbr.rel target = $region64
            $region63: #{tpu_custom_call.1} parent=55 // pred_region
              %s303 = ssub.s32 256, 1
              loop: start=0, step=1, limit=1
              $region65: #{tpu_custom_call.1} parent=63 // loop_pre_header
                _
              $region66: #{tpu_custom_call.1} parent=63 // loop_header
                %s305 = sphi 0, %s309
                %p306 = scmp.ge.s32.totalorder %s305, 1
                %s310 = sphi %s295, %s295
                %s311 = sphi %s293, %s293
              $region67: #{tpu_custom_call.1} parent=63 // loop_header_branch
                %308 = sbr.rel (%p306) target = $region71
              $region68: #{tpu_custom_call.1} parent=63 // loop_body
                %v312 = vld [vmem:[%s310] sm:%s303]
                %313 = vst [vmem:[%s311] sm:%s303] %v312
                %v314 = vld [vmem:[%s310 + $0x10] sm:%s303]
                %315 = vst [vmem:[%s311 + $0x8] sm:%s303] %v314
                %v316 = vld [vmem:[%s310 + $0x20] sm:%s303]
                %317 = vst [vmem:[%s311 + $0x10] sm:%s303] %v316
              $region69: #{tpu_custom_call.1} parent=63 // loop_footer
                %s309 = sadd.s32 1, %s305
              $region70: #{tpu_custom_call.1} parent=63 // loop_footer_branch
                %304 = sbr.rel target = $region66
              $region71: #{tpu_custom_call.1} parent=63 // loop_exit
                _
            $region64: #{tpu_custom_call.1} parent=55 // pred_fallthru
              _
          $region56: #{tpu_custom_call.1} parent=51 // pred_fallthru
            _
          %336 = vnop
        $region52: #{tpu_custom_call.1} parent=47 // pred_fallthru
          _
      $region48: #{tpu_custom_call.1} parent=5 // pred_fallthru
        _
      %p337 = scmp.le.s32.totalorder 1, %s24
      %p338 = scmp.lt.s32.totalorder %s24, 3
      %p339 = pnand %p337, %p338
      %p340 = pneg %p339
      // Predicated region
      $region87: #{tpu_custom_call.1} parent=5 // pred_check
        _
      $region88: #{tpu_custom_call.1} parent=5 // pred_check_branch
        %342 = sbr.rel (%p339) target = $region90
      $region89: #{tpu_custom_call.1} parent=5 // pred_region
        %s343 = ssub.s32 %s24, 1
        %s344 = sand.u32 %s37, 1
        %s345 = sand.u32 %s37, 1
        %s346 = smul.addr %s345, 24
        %s347 = scalar_lea.vmem [#allocation5], %s346
        // Predicated region
        $region91: #{tpu_custom_call.1} parent=89 // pred_check
          %p348 = pneg %p50
        $region92: #{tpu_custom_call.1} parent=89 // pred_check_branch
          %350 = sbr.rel (%p348) target = $region94
        $region93: #{tpu_custom_call.1} parent=89 // pred_region
          _
        $region94: #{tpu_custom_call.1} parent=89 // pred_fallthru
          _
        %s351 = sand.u32 %s37, 1
        %s352 = sand.u32 %s37, 1
        %s353 = smul.addr %s352, 24
        %s354 = scalar_lea.vmem [#allocation5], %s353
        %p355 = pneg %p50
        %p356 = pneg %p47
        %p357 = pneg %p71
        %p358 = pneg %p68
        %p359 = pneg %p92
        %p360 = pneg %p89
        %p361 = pneg %p113
        %p362 = pneg %p110
        %p363 = pneg %p134
        %p364 = pneg %p131
        %p365 = pneg %p155
        %p366 = pneg %p152
        %p367 = pneg %p176
        %p368 = pneg %p173
        %p369 = pneg %p197
        %p370 = pneg %p194
        %p371 = pneg %p218
        %p372 = pneg %p215
        %p373 = pneg %p244
        %p374 = pneg %p241
        %s375 = sand.u32 %s231, 1
        %s376 = scalar_lea.sflag [#allocation7], %s375
        %s377 = sand.u32 %s231, 1
        %s378 = scalar_lea.vmem [#allocation6], %s377
        %v379 = vld [vmem:[%s347] sm:$0xff]
        %v380 = vld [vmem:[%s347 + $0x8] sm:$0xff]
        %v381 = vld [vmem:[%s347 + $0x10] sm:$0x3]
        %v382 = vld [vmem:[%s1] sm:$0xff]
        %v383 = vld [vmem:[%s1 + $0x8] sm:$0xff]
        %v384 = vld [vmem:[%s1 + $0x10] sm:$0xff]
        %v385 = vld [vmem:[%s1 + $0x18] sm:$0xff]
        %v386 = vld [vmem:[%s1 + $0x20] sm:$0xff]
        %v387 = vld [vmem:[%s2] sm:$0xff]
        %v388 = vld [vmem:[%s2 + $0x8] sm:$0xff]
        %v389 = vld [vmem:[%s2 + $0x10] sm:$0xff]
        %v390 = vld [vmem:[%s2 + $0x18] sm:$0xff]
        %v391 = vld [vmem:[%s2 + $0x20] sm:$0xff]
        %393 = vset.pattern.permute.xlu0 0
        %394 = vperm.xlu0 %393, %v387
        %v395 = vpop.permute.xlu0 %394
        %398 = vset.pattern.permute.xlu0 0
        %399 = vperm.xlu0 %398, %v388
        %v400 = vpop.permute.xlu0 %399
        %403 = vset.pattern.permute.xlu0 0
        %404 = vperm.xlu0 %403, %v389
        %v405 = vpop.permute.xlu0 %404
        %408 = vset.pattern.permute.xlu0 0
        %409 = vperm.xlu0 %408, %v390
        %v410 = vpop.permute.xlu0 %409
        %413 = vset.pattern.permute.xlu0 0
        %414 = vperm.xlu0 %413, %v391
        %v415 = vpop.permute.xlu0 %414
        %vm417 = vcmask 146432
        %v419 = vsel %vm417, %v382, 0
        %v422 = vsel %vm417, %v383, 0
        %v425 = vsel %vm417, %v384, 0
        %v428 = vsel %vm417, %v385, 0
        %v431 = vsel %vm417, %v386, 0
        %vm433 = vcmask 1041408
        %v435 = vsel %vm433, %v381, 0
        %437 = vmatpush.msra.mxu0 0.0
        %438 = vmatpush.msra.mxu0 0.0
        %439 = vmatpush.msra.mxu0 0.0
        %440 = vmatpush.msra.mxu0 0.0
        %441 = vmatpush.msra.mxu0 0.0
        %442 = vmatpush.msra.mxu0 0.0
        %443 = vmatpush.msra.mxu0 0.0
        %444 = vmatpush.msra.mxu0 0.0
        %445 = vmatpush.msra.mxu0 0.0
        %446 = vmatpush.msra.mxu0 0.0
        %447 = vmatpush.msra.mxu0 0.0
        %448 = vmatpush.msra.mxu0 0.0
        %449 = vmatpush.msra.mxu0 0.0
        %450 = vmatpush.msra.mxu0 %v435
        %451 = vmatpush.msra.mxu0 %v380
        %452 = vmatpush.msra.mxu0 %v379
        %453 = vmatmul.f32.gmra.mxu0 %v419
        %v454 = vpop.f32.mrf.mxu0
        %v455 = vadd.f32 %v395, %v454
        %456 = vmatmul.f32.gmra.mxu0 %v422
        %v457 = vpop.f32.mrf.mxu0
        %v458 = vadd.f32 %v400, %v457
        %459 = vmatmul.f32.gmra.mxu0 %v425
        %v460 = vpop.f32.mrf.mxu0
        %v461 = vadd.f32 %v405, %v460
        %462 = vmatmul.f32.gmra.mxu0 %v428
        %v463 = vpop.f32.mrf.mxu0
        %v464 = vadd.f32 %v410, %v463
        %465 = vmatmul.f32.gmra.mxu0 %v431
        %v466 = vpop.f32.mrf.mxu0
        %v467 = vadd.f32 %v415, %v466
        %468 = vdwg.mxu0
        %v469 = vtanh.pop %v455
        %v470 = vtanh.pop %v458
        %v471 = vtanh.pop %v461
        %v472 = vtanh.pop %v464
        %v473 = vtanh.pop %v467
        %v474 = vld [vmem:[%s3] sm:$0xff]
        %v475 = vld [vmem:[%s3 + $0x8] sm:$0xff]
        %v476 = vld [vmem:[%s3 + $0x10] sm:$0xff]
        %v477 = vld [vmem:[%s3 + $0x18] sm:$0xff]
        %v478 = vld [vmem:[%s3 + $0x20] sm:$0xff]
        %v479 = vld [vmem:[%s4] sm:$0xff]
        %v480 = vld [vmem:[%s4 + $0x8] sm:$0xff]
        %v481 = vld [vmem:[%s4 + $0x10] sm:$0xff]
        %v482 = vld [vmem:[%s4 + $0x18] sm:$0xff]
        %v483 = vld [vmem:[%s4 + $0x20] sm:$0xff]
        %485 = vset.pattern.permute.xlu0 0
        %486 = vperm.xlu0 %485, %v479
        %v487 = vpop.permute.xlu0 %486
        %490 = vset.pattern.permute.xlu0 0
        %491 = vperm.xlu0 %490, %v480
        %v492 = vpop.permute.xlu0 %491
        %495 = vset.pattern.permute.xlu0 0
        %496 = vperm.xlu0 %495, %v481
        %v497 = vpop.permute.xlu0 %496
        %500 = vset.pattern.permute.xlu0 0
        %501 = vperm.xlu0 %500, %v482
        %v502 = vpop.permute.xlu0 %501
        %505 = vset.pattern.permute.xlu0 0
        %506 = vperm.xlu0 %505, %v483
        %v507 = vpop.permute.xlu0 %506
        %vm509 = vcmask 326656
        %v511 = vsel %vm509, %v474, 0
        %v514 = vsel %vm509, %v475, 0
        %v517 = vsel %vm509, %v476, 0
        %v520 = vsel %vm509, %v477, 0
        %v523 = vsel %vm509, %v478, 0
        %525 = vmatpush.msra.mxu0 0.0
        %526 = vmatpush.msra.mxu0 0.0
        %527 = vmatpush.msra.mxu0 0.0
        %528 = vmatpush.msra.mxu0 0.0
        %529 = vmatpush.msra.mxu0 0.0
        %530 = vmatpush.msra.mxu0 0.0
        %531 = vmatpush.msra.mxu0 0.0
        %532 = vmatpush.msra.mxu0 0.0
        %533 = vmatpush.msra.mxu0 0.0
        %534 = vmatpush.msra.mxu0 0.0
        %535 = vmatpush.msra.mxu0 0.0
        %536 = vmatpush.msra.mxu0 %v473
        %537 = vmatpush.msra.mxu0 %v472
        %538 = vmatpush.msra.mxu0 %v471
        %539 = vmatpush.msra.mxu0 %v470
        %540 = vmatpush.msra.mxu0 %v469
        %541 = vmatmul.f32.gmra.mxu0 %v511
        %v542 = vpop.f32.mrf.mxu0
        %v543 = vadd.f32 %v487, %v542
        %544 = vmatmul.f32.gmra.mxu0 %v514
        %v545 = vpop.f32.mrf.mxu0
        %v546 = vadd.f32 %v492, %v545
        %547 = vmatmul.f32.gmra.mxu0 %v517
        %v548 = vpop.f32.mrf.mxu0
        %v549 = vadd.f32 %v497, %v548
        %550 = vmatmul.f32.gmra.mxu0 %v520
        %v551 = vpop.f32.mrf.mxu0
        %v552 = vadd.f32 %v502, %v551
        %553 = vmatmul.f32.gmra.mxu0 %v523
        %v554 = vpop.f32.mrf.mxu0
        %v555 = vadd.f32 %v507, %v554
        %556 = vdwg.mxu0
        %v557 = vtanh.pop %v543
        %v558 = vtanh.pop %v546
        %v559 = vtanh.pop %v549
        %v560 = vtanh.pop %v552
        %v561 = vtanh.pop %v555
        %v562 = vld [vmem:[%s5] sm:$0xff]
        %v563 = vld [vmem:[%s5 + $0x8] sm:$0xff]
        %v564 = vld [vmem:[%s5 + $0x10] sm:$0xff]
        %v565 = vld [vmem:[%s5 + $0x18] sm:$0xff]
        %v566 = vld [vmem:[%s5 + $0x20] sm:$0xff]
        %568 = vset.pattern.permute.xlu0 0
        %569 = vperm.xlu0 %568, %v562
        %v570 = vpop.permute.xlu0 %569
        %573 = vset.pattern.permute.xlu0 0
        %574 = vperm.xlu0 %573, %v563
        %v575 = vpop.permute.xlu0 %574
        %578 = vset.pattern.permute.xlu0 0
        %579 = vperm.xlu0 %578, %v564
        %v580 = vpop.permute.xlu0 %579
        %583 = vset.pattern.permute.xlu0 0
        %584 = vperm.xlu0 %583, %v565
        %v585 = vpop.permute.xlu0 %584
        %588 = vset.pattern.permute.xlu0 0
        %589 = vperm.xlu0 %588, %v566
        %v590 = vpop.permute.xlu0 %589
        %v592 = vmul.f32 %v557, %v570
        %v593 = vmul.f32 %v558, %v575
        %v594 = vmul.f32 %v559, %v580
        %v595 = vmul.f32 %v560, %v585
        %v596 = vmul.f32 %v561, %v590
        %v597 = vadd.f32 %v592, %v593
        %v598 = vadd.f32 %v597, %v594
        %v599 = vadd.f32 %v598, %v595
        %v600 = vadd.f32 %v599, %v596
        %v601 = vrot.slane %v600, 4
        %v602 = vadd.f32 %v600, %v601
        %v603 = vrot.slane %v602, 2
        %v604 = vadd.f32 %v602, %v603
        %v605 = vrot.slane %v604, 1
        %v606 = vadd.f32 %v604, %v605
        %v607 = vld [vmem:[#allocation2] sm:$0x1]
        %609 = vset.pattern.permute.xlu0 0
        %610 = vperm.xlu0 %609, %v607
        %v611 = vpop.permute.xlu0 %610
        %v613 = vperm.slane %v611, 0
        %v614 = vadd.f32 %v606, %v613
        %v615 = vtanh.pop %v614
        %v616 = vld [vmem:[#allocation3] sm:$0x1]
        %618 = vset.pattern.permute.xlu0 0
        %619 = vperm.xlu0 %618, %v616
        %v620 = vpop.permute.xlu0 %619
        %v622 = vperm.slane %v620, 0
        %v623 = vmul.f32 %v615, %v622
        %v624 = vld [vmem:[#allocation4] sm:$0x1]
        %626 = vset.pattern.permute.xlu0 0
        %627 = vperm.xlu0 %626, %v624
        %v628 = vpop.permute.xlu0 %627
        %v630 = vperm.slane %v628, 0
        %v631 = vadd.f32 %v623, %v630
        %v632 = vtanh.pop %v631
        %633 = vst [vmem:[%s378] sm:$0x1] %v632
        %s634 = sand.u32 %s231, 1
        %s635 = scalar_lea.sflag [#allocation7], %s634
        %s636 = sand.u32 %s231, 1
        %s637 = scalar_lea.vmem [#allocation6], %s636
        // Predicated region
        $region95: #{tpu_custom_call.1} parent=89 // pred_check
          %p638 = pneg %p241
        $region96: #{tpu_custom_call.1} parent=89 // pred_check_branch
          %640 = sbr.rel (%p638) target = $region98
        $region97: #{tpu_custom_call.1} parent=89 // pred_region
          %642 = vsyncadd %s635, 0
          %s643 = scalar_lea.hbm %s9, %s29
          %s645 = sshll.u32 %s637, 4
          %s646 = int_to_ptr.vmem [resolvable:$true] %s645
          %s647 = sshll.u32 %s643, 4
          %s648 = int_to_ptr.hbm [resolvable:$true] %s647
          %650 = dma.vmem_to_hbm [thread:$0]  %s646, 16, %s648, %s635
        $region98: #{tpu_custom_call.1} parent=89 // pred_fallthru
          _
      $region90: #{tpu_custom_call.1} parent=5 // pred_fallthru
        _
      %p651 = scmp.le.s32.totalorder 2, %s24
      // Predicated region
      $region99: #{tpu_custom_call.1} parent=5 // pred_check
        %p652 = pneg %p651
      $region100: #{tpu_custom_call.1} parent=5 // pred_check_branch
        %654 = sbr.rel (%p652) target = $region102
      $region101: #{tpu_custom_call.1} parent=5 // pred_region
        %s655 = ssub.s32 %s24, 2
        // Predicated region
        $region103: #{tpu_custom_call.1} parent=101 // pred_check
          %p656 = pneg %p247
        $region104: #{tpu_custom_call.1} parent=101 // pred_check_branch
          %658 = sbr.rel (%p656) target = $region106
        $region105: #{tpu_custom_call.1} parent=101 // pred_region
          %s659 = sand.u32 %s232, 1
          %s660 = scalar_lea.sflag [#allocation7], %s659
          %s661 = sand.u32 %s232, 1
          %s662 = scalar_lea.vmem [#allocation6], %s661
          %664 = dma.done %s660, 16
        $region106: #{tpu_custom_call.1} parent=101 // pred_fallthru
          _
      $region102: #{tpu_custom_call.1} parent=5 // pred_fallthru
        _
    $region6: #{tpu_custom_call.1} parent=1 // loop_footer
      %s28 = sadd.s32 1, %s24
    $region7: #{tpu_custom_call.1} parent=1 // loop_footer_branch
      %23 = sbr.rel target = $region3
    $region8: #{tpu_custom_call.1} parent=1 // loop_exit
      _
    %665 = vsyncpa [#allocation7], 1
    %s666 = scalar_lea.sflag [#allocation7], 1
    %667 = vsyncpa %s666, 1

</llo_original>
